<compile_context>
chip_gen: v7x
topology: tpu7x:2x2x1
jax: 0.10.0
libtpu: 0.0.40
codegen_flags: <defaults>
</compile_context>

<pallas_src>
import jax
import jax.numpy as jnp
from jax.experimental import pallas as pl
from jax.experimental.pallas import tpu as pltpu

OUT_DIM = 2      # real output width of fc6
OUT_PAD = 128    # lane-dense padded output width


def _round_up(x, m):
    return (x + m - 1) // m * m


def _mlp_kernel(x_ref,
                w1_ref, b1_ref, w2_ref, b2_ref, w3_ref, b3_ref,
                w4_ref, b4_ref, w5_ref, b5_ref, w6_ref, b6_ref,
                o_ref):
    """One batch tile through all six layers (weights are VMEM-resident)."""
    # dropout == identity (eval mode)
    h = x_ref[...]  # bf16 (TILE_B, F)

    def lin(h_lo, w_ref, b_ref):
        # bf16 MXU matmul with f32 accumulation; bias add in f32.
        return jnp.dot(h_lo, w_ref[...],
                       preferred_element_type=jnp.float32) + b_ref[...]

    h = jnp.tanh(lin(h, w1_ref, b1_ref)).astype(jnp.bfloat16)   # F  -> 16
    h = jnp.tanh(lin(h, w2_ref, b2_ref)).astype(jnp.bfloat16)   # 16 -> 32
    h = jnp.tanh(lin(h, w3_ref, b3_ref)).astype(jnp.bfloat16)   # 32 -> 16
    h = jnp.tanh(lin(h, w4_ref, b4_ref)).astype(jnp.bfloat16)   # 16 -> 8
    h = jnp.tanh(lin(h, w5_ref, b5_ref)).astype(jnp.bfloat16)   # 8  -> 4
    out = lin(h, w6_ref, b6_ref)                                # 4  -> 128 (padded), no act

    o_ref[...] = out  # f32, lane-dense (TILE_B, 128)


def reinforce_forward(x, params, tile_b=256):
    """x: [B, F] float32. params: list of (W, b) with W: [in, out], b: [out] or [1, out]."""
    B, F = x.shape

    # Tile size: multiple of 8 (f32/bf16 sublane), never larger than padded B.
    tile_b = max(8, min(_round_up(tile_b, 8), _round_up(B, 8)))
    B_pad = _round_up(B, tile_b)

    # Inputs: bf16 for the MXU; pad batch to a whole number of tiles.
    x_k = x.astype(jnp.bfloat16)
    if B_pad != B:
        x_k = jnp.pad(x_k, ((0, B_pad - B), (0, 0)))

    n_layers = len(params)
    flat = []
    for i, (w, b) in enumerate(params):
        w_k = w.astype(jnp.bfloat16)
        b_k = b.astype(jnp.float32).reshape(1, -1)
        if i == n_layers - 1:
            # Lane-dense final layer: pad 2 -> 128 output columns with zeros.
            w_k = jnp.pad(w_k, ((0, 0), (0, OUT_PAD - w_k.shape[1])))
            b_k = jnp.pad(b_k, ((0, 0), (0, OUT_PAD - b_k.shape[1])))
        flat.extend([w_k, b_k])

    in_specs = [pl.BlockSpec((tile_b, F), lambda i: (i, 0))]
    for a in flat:
        # Full-array block, constant index -> DMA'd once, stays VMEM-resident.
        in_specs.append(pl.BlockSpec(a.shape, lambda i: (0, 0)))

    out = pl.pallas_call(
        _mlp_kernel,
        grid=(pl.cdiv(B_pad, tile_b),),
        out_shape=jax.ShapeDtypeStruct((B_pad, OUT_PAD), jnp.float32),
        in_specs=in_specs,
        out_specs=pl.BlockSpec((tile_b, OUT_PAD), lambda i: (i, 0)),
        compiler_params=pltpu.CompilerParams(
            dimension_semantics=("parallel",)),
    )(x_k, *flat)

    return out[:B, :OUT_DIM]


def init_params(features, key):
    """Deterministic init mimicking nn.Linear's U(-1/sqrt(in), 1/sqrt(in))."""
    sizes = [(features, 16), (16, 32), (32, 16), (16, 8), (8, 4), (4, 2)]
    params = []
    for i, (fan_in, fan_out) in enumerate(sizes):
        kw, kb = jax.random.split(jax.random.fold_in(key, i))
        bound = 1.0 / (fan_in ** 0.5)
        w = jax.random.uniform(kw, (fan_in, fan_out), jnp.float32, -bound, bound)
        b = jax.random.uniform(kb, (1, fan_out), jnp.float32, -bound, bound)
        params.append((w, b))
    return params


def reference_forward_f32(x, params):
    """Plain-JAX f32 reference (PyTorch-equivalent math)."""
    h = x
    for i, (w, b) in enumerate(params):
        h = h @ w + b.reshape(1, -1)
        if i < len(params) - 1:
            h = jnp.tanh(h)
    return h


def reference_forward_bf16(x, params):
    """Plain-JAX reference with the same bf16-matmul / f32-accumulate recipe."""
    h = x.astype(jnp.bfloat16)
    for i, (w, b) in enumerate(params):
        y = jnp.dot(h, w.astype(jnp.bfloat16),
                    preferred_element_type=jnp.float32) + b.reshape(1, -1)
        if i < len(params) - 1:
            h = jnp.tanh(y).astype(jnp.bfloat16)
        else:
            h = y
    return h


if __name__ == "__main__":
    key = jax.random.PRNGKey(0)
    F = 4
    params = init_params(F, key)

    # Small shape consistent with the module (single TILE_B tile).
    B = 8
    x = jax.random.normal(jax.random.fold_in(key, 100), (B, F), jnp.float32)
    out = jax.block_until_ready(reinforce_forward(x, params))
    assert out.shape == (B, OUT_DIM), out.shape
    assert jnp.allclose(out, reference_forward_bf16(x, params), atol=1e-4, rtol=1e-4)
    assert jnp.allclose(out, reference_forward_f32(x, params), atol=5e-2, rtol=5e-2)

    # Exercise the batch grid + ragged-batch padding path (multiple tiles).
    B2 = 300
    x2 = jax.random.normal(jax.random.fold_in(key, 101), (B2, F), jnp.float32)
    out2 = jax.block_until_ready(reinforce_forward(x2, params, tile_b=128))
    assert out2.shape == (B2, OUT_DIM), out2.shape
    assert jnp.allclose(out2, reference_forward_bf16(x2, params), atol=1e-4, rtol=1e-4)
    assert jnp.allclose(out2, reference_forward_f32(x2, params), atol=5e-2, rtol=5e-2)

    print("KERNEL_OK")
</pallas_src>

<mosaic_0001>
module attributes {stable_mosaic.version = 11 : i64} {
  func.func @_mlp_kernel(%arg0: i32, %arg1: memref<8x4xbf16, #tpu.memory_space<vmem>>, %arg2: memref<4x16xbf16, #tpu.memory_space<vmem>>, %arg3: memref<1x16xf32, #tpu.memory_space<vmem>>, %arg4: memref<16x32xbf16, #tpu.memory_space<vmem>>, %arg5: memref<1x32xf32, #tpu.memory_space<vmem>>, %arg6: memref<32x16xbf16, #tpu.memory_space<vmem>>, %arg7: memref<1x16xf32, #tpu.memory_space<vmem>>, %arg8: memref<16x8xbf16, #tpu.memory_space<vmem>>, %arg9: memref<1x8xf32, #tpu.memory_space<vmem>>, %arg10: memref<8x4xbf16, #tpu.memory_space<vmem>>, %arg11: memref<1x4xf32, #tpu.memory_space<vmem>>, %arg12: memref<4x128xbf16, #tpu.memory_space<vmem>>, %arg13: memref<1x128xf32, #tpu.memory_space<vmem>>, %arg14: memref<8x128xf32, #tpu.memory_space<vmem>>) attributes {dimension_semantics = [#tpu.dimension_semantics<parallel>], iteration_bounds = array<i64: 1>, scalar_prefetch = 0 : i64, scratch_operands = 0 : i64, tpu.core_type = #tpu.core_type<tc>, window_params = [{transform_indices = @transform_0, window_bounds = array<i64: 8, 4>}, {pipeline_mode = #tpu.pipeline_mode<synchronous>, transform_indices = @transform_1, window_bounds = array<i64: 4, 16>}, {pipeline_mode = #tpu.pipeline_mode<synchronous>, transform_indices = @transform_2, window_bounds = array<i64: 1, 16>}, {pipeline_mode = #tpu.pipeline_mode<synchronous>, transform_indices = @transform_3, window_bounds = array<i64: 16, 32>}, {pipeline_mode = #tpu.pipeline_mode<synchronous>, transform_indices = @transform_4, window_bounds = array<i64: 1, 32>}, {pipeline_mode = #tpu.pipeline_mode<synchronous>, transform_indices = @transform_5, window_bounds = array<i64: 32, 16>}, {pipeline_mode = #tpu.pipeline_mode<synchronous>, transform_indices = @transform_6, window_bounds = array<i64: 1, 16>}, {pipeline_mode = #tpu.pipeline_mode<synchronous>, transform_indices = @transform_7, window_bounds = array<i64: 16, 8>}, {pipeline_mode = #tpu.pipeline_mode<synchronous>, transform_indices = @transform_8, window_bounds = array<i64: 1, 8>}, {pipeline_mode = #tpu.pipeline_mode<synchronous>, transform_indices = @transform_9, window_bounds = array<i64: 8, 4>}, {pipeline_mode = #tpu.pipeline_mode<synchronous>, transform_indices = @transform_10, window_bounds = array<i64: 1, 4>}, {pipeline_mode = #tpu.pipeline_mode<synchronous>, transform_indices = @transform_11, window_bounds = array<i64: 4, 128>}, {pipeline_mode = #tpu.pipeline_mode<synchronous>, transform_indices = @transform_12, window_bounds = array<i64: 1, 128>}, {transform_indices = @transform_13, window_bounds = array<i64: 8, 128>}]} {
    %c0 = arith.constant 0 : index
    %c0_0 = arith.constant 0 : index
    %0 = vector.load %arg1[%c0, %c0_0] : memref<8x4xbf16, #tpu.memory_space<vmem>>, vector<8x4xbf16>
    %c0_1 = arith.constant 0 : index
    %c0_2 = arith.constant 0 : index
    %1 = vector.load %arg2[%c0_1, %c0_2] : memref<4x16xbf16, #tpu.memory_space<vmem>>, vector<4x16xbf16>
    %cst = arith.constant dense<0.000000e+00> : vector<8x16xf32>
    %2 = tpu.matmul %0, %1, %cst {dimension_numbers = #tpu.dot_dimension_numbers<[1], [0], [0], [1], [0, 0, 1, 1], [], []>} : vector<8x4xbf16>, vector<4x16xbf16>, vector<8x16xf32> -> vector<8x16xf32>
    %c0_3 = arith.constant 0 : index
    %c0_4 = arith.constant 0 : index
    %3 = vector.load %arg3[%c0_3, %c0_4] : memref<1x16xf32, #tpu.memory_space<vmem>>, vector<1x16xf32>
    %4 = vector.broadcast %3 : vector<1x16xf32> to vector<8x16xf32>
    %5 = arith.addf %2, %4 : vector<8x16xf32>
    %6 = math.tanh %5 : vector<8x16xf32>
    %7 = arith.truncf %6 : vector<8x16xf32> to vector<8x16xbf16>
    %c0_5 = arith.constant 0 : index
    %c0_6 = arith.constant 0 : index
    %8 = vector.load %arg4[%c0_5, %c0_6] : memref<16x32xbf16, #tpu.memory_space<vmem>>, vector<16x32xbf16>
    %cst_7 = arith.constant dense<0.000000e+00> : vector<8x32xf32>
    %9 = tpu.matmul %7, %8, %cst_7 {dimension_numbers = #tpu.dot_dimension_numbers<[1], [0], [0], [1], [0, 0, 1, 1], [], []>} : vector<8x16xbf16>, vector<16x32xbf16>, vector<8x32xf32> -> vector<8x32xf32>
    %c0_8 = arith.constant 0 : index
    %c0_9 = arith.constant 0 : index
    %10 = vector.load %arg5[%c0_8, %c0_9] : memref<1x32xf32, #tpu.memory_space<vmem>>, vector<1x32xf32>
    %11 = vector.broadcast %10 : vector<1x32xf32> to vector<8x32xf32>
    %12 = arith.addf %9, %11 : vector<8x32xf32>
    %13 = math.tanh %12 : vector<8x32xf32>
    %14 = arith.truncf %13 : vector<8x32xf32> to vector<8x32xbf16>
    %c0_10 = arith.constant 0 : index
    %c0_11 = arith.constant 0 : index
    %15 = vector.load %arg6[%c0_10, %c0_11] : memref<32x16xbf16, #tpu.memory_space<vmem>>, vector<32x16xbf16>
    %cst_12 = arith.constant dense<0.000000e+00> : vector<8x16xf32>
    %16 = tpu.matmul %14, %15, %cst_12 {dimension_numbers = #tpu.dot_dimension_numbers<[1], [0], [0], [1], [0, 0, 1, 1], [], []>} : vector<8x32xbf16>, vector<32x16xbf16>, vector<8x16xf32> -> vector<8x16xf32>
    %c0_13 = arith.constant 0 : index
    %c0_14 = arith.constant 0 : index
    %17 = vector.load %arg7[%c0_13, %c0_14] : memref<1x16xf32, #tpu.memory_space<vmem>>, vector<1x16xf32>
    %18 = vector.broadcast %17 : vector<1x16xf32> to vector<8x16xf32>
    %19 = arith.addf %16, %18 : vector<8x16xf32>
    %20 = math.tanh %19 : vector<8x16xf32>
    %21 = arith.truncf %20 : vector<8x16xf32> to vector<8x16xbf16>
    %c0_15 = arith.constant 0 : index
    %c0_16 = arith.constant 0 : index
    %22 = vector.load %arg8[%c0_15, %c0_16] : memref<16x8xbf16, #tpu.memory_space<vmem>>, vector<16x8xbf16>
    %cst_17 = arith.constant dense<0.000000e+00> : vector<8x8xf32>
    %23 = tpu.matmul %21, %22, %cst_17 {dimension_numbers = #tpu.dot_dimension_numbers<[1], [0], [0], [1], [0, 0, 1, 1], [], []>} : vector<8x16xbf16>, vector<16x8xbf16>, vector<8x8xf32> -> vector<8x8xf32>
    %c0_18 = arith.constant 0 : index
    %c0_19 = arith.constant 0 : index
    %24 = vector.load %arg9[%c0_18, %c0_19] : memref<1x8xf32, #tpu.memory_space<vmem>>, vector<1x8xf32>
    %25 = vector.broadcast %24 : vector<1x8xf32> to vector<8x8xf32>
    %26 = arith.addf %23, %25 : vector<8x8xf32>
    %27 = math.tanh %26 : vector<8x8xf32>
    %28 = arith.truncf %27 : vector<8x8xf32> to vector<8x8xbf16>
    %c0_20 = arith.constant 0 : index
    %c0_21 = arith.constant 0 : index
    %29 = vector.load %arg10[%c0_20, %c0_21] : memref<8x4xbf16, #tpu.memory_space<vmem>>, vector<8x4xbf16>
    %cst_22 = arith.constant dense<0.000000e+00> : vector<8x4xf32>
    %30 = tpu.matmul %28, %29, %cst_22 {dimension_numbers = #tpu.dot_dimension_numbers<[1], [0], [0], [1], [0, 0, 1, 1], [], []>} : vector<8x8xbf16>, vector<8x4xbf16>, vector<8x4xf32> -> vector<8x4xf32>
    %c0_23 = arith.constant 0 : index
    %c0_24 = arith.constant 0 : index
    %31 = vector.load %arg11[%c0_23, %c0_24] : memref<1x4xf32, #tpu.memory_space<vmem>>, vector<1x4xf32>
    %32 = vector.broadcast %31 : vector<1x4xf32> to vector<8x4xf32>
    %33 = arith.addf %30, %32 : vector<8x4xf32>
    %34 = math.tanh %33 : vector<8x4xf32>
    %35 = arith.truncf %34 : vector<8x4xf32> to vector<8x4xbf16>
    %c0_25 = arith.constant 0 : index
    %c0_26 = arith.constant 0 : index
    %36 = vector.load %arg12[%c0_25, %c0_26] : memref<4x128xbf16, #tpu.memory_space<vmem>>, vector<4x128xbf16>
    %cst_27 = arith.constant dense<0.000000e+00> : vector<8x128xf32>
    %37 = tpu.matmul %35, %36, %cst_27 {dimension_numbers = #tpu.dot_dimension_numbers<[1], [0], [0], [1], [0, 0, 1, 1], [], []>} : vector<8x4xbf16>, vector<4x128xbf16>, vector<8x128xf32> -> vector<8x128xf32>
    %c0_28 = arith.constant 0 : index
    %c0_29 = arith.constant 0 : index
    %38 = vector.load %arg13[%c0_28, %c0_29] : memref<1x128xf32, #tpu.memory_space<vmem>>, vector<1x128xf32>
    %39 = vector.broadcast %38 : vector<1x128xf32> to vector<8x128xf32>
    %40 = arith.addf %37, %39 : vector<8x128xf32>
    %c0_30 = arith.constant 0 : index
    %c0_31 = arith.constant 0 : index
    %41 = vector.load %arg14[%c0_30, %c0_31] : memref<8x128xf32, #tpu.memory_space<vmem>>, vector<8x128xf32>
    tpu.vector_store %arg14[%c0_30, %c0_31], %40 {strides = array<i32>} : memref<8x128xf32, #tpu.memory_space<vmem>>, vector<8x128xf32>,
    return
  }
  func.func @transform_0(%arg0: i32) -> (i32, i32) {
    %c0_i32 = arith.constant 0 : i32
    %c0_i32_0 = arith.constant 0 : i32
    return %arg0, %c0_i32 : i32, i32
  }
  func.func @transform_1(%arg0: i32) -> (i32, i32) {
    %c0_i32 = arith.constant 0 : i32
    %c0_i32_0 = arith.constant 0 : i32
    %c0_i32_1 = arith.constant 0 : i32
    return %c0_i32, %c0_i32_0 : i32, i32
  }
  func.func @transform_2(%arg0: i32) -> (i32, i32) {
    %c0_i32 = arith.constant 0 : i32
    %c0_i32_0 = arith.constant 0 : i32
    %c0_i32_1 = arith.constant 0 : i32
    return %c0_i32, %c0_i32_0 : i32, i32
  }
  func.func @transform_3(%arg0: i32) -> (i32, i32) {
    %c0_i32 = arith.constant 0 : i32
    %c0_i32_0 = arith.constant 0 : i32
    %c0_i32_1 = arith.constant 0 : i32
    return %c0_i32, %c0_i32_0 : i32, i32
  }
  func.func @transform_4(%arg0: i32) -> (i32, i32) {
    %c0_i32 = arith.constant 0 : i32
    %c0_i32_0 = arith.constant 0 : i32
    %c0_i32_1 = arith.constant 0 : i32
    return %c0_i32, %c0_i32_0 : i32, i32
  }
  func.func @transform_5(%arg0: i32) -> (i32, i32) {
    %c0_i32 = arith.constant 0 : i32
    %c0_i32_0 = arith.constant 0 : i32
    %c0_i32_1 = arith.constant 0 : i32
    return %c0_i32, %c0_i32_0 : i32, i32
  }
  func.func @transform_6(%arg0: i32) -> (i32, i32) {
    %c0_i32 = arith.constant 0 : i32
    %c0_i32_0 = arith.constant 0 : i32
    %c0_i32_1 = arith.constant 0 : i32
    return %c0_i32, %c0_i32_0 : i32, i32
  }
  func.func @transform_7(%arg0: i32) -> (i32, i32) {
    %c0_i32 = arith.constant 0 : i32
    %c0_i32_0 = arith.constant 0 : i32
    %c0_i32_1 = arith.constant 0 : i32
    return %c0_i32, %c0_i32_0 : i32, i32
  }
  func.func @transform_8(%arg0: i32) -> (i32, i32) {
    %c0_i32 = arith.constant 0 : i32
    %c0_i32_0 = arith.constant 0 : i32
    %c0_i32_1 = arith.constant 0 : i32
    return %c0_i32, %c0_i32_0 : i32, i32
  }
  func.func @transform_9(%arg0: i32) -> (i32, i32) {
    %c0_i32 = arith.constant 0 : i32
    %c0_i32_0 = arith.constant 0 : i32
    %c0_i32_1 = arith.constant 0 : i32
    return %c0_i32, %c0_i32_0 : i32, i32
  }
  func.func @transform_10(%arg0: i32) -> (i32, i32) {
    %c0_i32 = arith.constant 0 : i32
    %c0_i32_0 = arith.constant 0 : i32
    %c0_i32_1 = arith.constant 0 : i32
    return %c0_i32, %c0_i32_0 : i32, i32
  }
  func.func @transform_11(%arg0: i32) -> (i32, i32) {
    %c0_i32 = arith.constant 0 : i32
    %c0_i32_0 = arith.constant 0 : i32
    %c0_i32_1 = arith.constant 0 : i32
    return %c0_i32, %c0_i32_0 : i32, i32
  }
  func.func @transform_12(%arg0: i32) -> (i32, i32) {
    %c0_i32 = arith.constant 0 : i32
    %c0_i32_0 = arith.constant 0 : i32
    %c0_i32_1 = arith.constant 0 : i32
    return %c0_i32, %c0_i32_0 : i32, i32
  }
  func.func @transform_13(%arg0: i32) -> (i32, i32) {
    %c0_i32 = arith.constant 0 : i32
    %c0_i32_0 = arith.constant 0 : i32
    return %arg0, %c0_i32 : i32, i32
  }
}

</mosaic_0001>

<llo_original>
// kernel: tpu_custom_call.1
$region0: #{tpu_custom_call.1}
  #allocation0 [shape = 'u32[]', space=smem, size = 0x4, offset = 0x4, fixed_abs, tag = 'smem constant byte address 0x4 - core index']
  #allocation1 [shape = 'u32[144,128]{1,0:T(1,128)}', space=vmem, size = 0x12000, scoped, tag = 'internal scratch']
  %s0 = inlined_call_operand.vmem [shape: bf16[8,4], index: 0, kind: input, shape index: {}]
  %s1 = inlined_call_operand.vmem [shape: bf16[4,16], index: 1, kind: input, shape index: {}]
  %s2 = inlined_call_operand.vmem [shape: f32[1,16], index: 2, kind: input, shape index: {}]
  %s3 = inlined_call_operand.vmem [shape: bf16[16,32], index: 3, kind: input, shape index: {}]
  %s4 = inlined_call_operand.vmem [shape: f32[1,32], index: 4, kind: input, shape index: {}]
  %s5 = inlined_call_operand.vmem [shape: bf16[32,16], index: 5, kind: input, shape index: {}]
  %s6 = inlined_call_operand.vmem [shape: f32[1,16], index: 6, kind: input, shape index: {}]
  %s7 = inlined_call_operand.vmem [shape: bf16[16,8], index: 7, kind: input, shape index: {}]
  %s8 = inlined_call_operand.vmem [shape: f32[1,8], index: 8, kind: input, shape index: {}]
  %s9 = inlined_call_operand.vmem [shape: bf16[8,4], index: 9, kind: input, shape index: {}]
  %s10 = inlined_call_operand.vmem [shape: f32[1,4], index: 10, kind: input, shape index: {}]
  %s11 = inlined_call_operand.vmem [shape: bf16[4,128], index: 11, kind: input, shape index: {}]
  %s12 = inlined_call_operand.vmem [shape: f32[1,128], index: 12, kind: input, shape index: {}]
  %s13 = inlined_call_operand.hbm [shape: f32[8,128], index: 13, kind: output, shape index: {}]
  %s14 = sld [smem:[#allocation0]]
  $region62: #{tpu_custom_call.1} parent=0
    _
  %s16 = ssub.s32 1, %s14
  %s17 = scalar_select 0, %s16, %s14
  $region1: #{tpu_custom_call.1} parent=0
    #allocation2 [shape = 'u8[4096]{0}', space=vmem, size = 0x1000, scoped, tag = 'output window, operand 0, single buffered']
    #allocation3 [shape = 's32[1]{0}', space=sflag, size = 0x4, scoped, tag = 'scoped memory for tpu_custom_call.1']
    %18 = vsyncpa [#allocation3], 0
    // Predicated region
    $region2: #{tpu_custom_call.1} parent=1 // pred_check
      _
    $region3: #{tpu_custom_call.1} parent=1 // pred_check_branch
      %20 = sbr.rel (0) target = $region5
    $region4: #{tpu_custom_call.1} parent=1 // pred_region
      _
    $region5: #{tpu_custom_call.1} parent=1 // pred_fallthru
      _
    // Predicated region
    $region6: #{tpu_custom_call.1} parent=1 // pred_check
      _
    $region7: #{tpu_custom_call.1} parent=1 // pred_check_branch
      %22 = sbr.rel (0) target = $region9
    $region8: #{tpu_custom_call.1} parent=1 // pred_region
      _
    $region9: #{tpu_custom_call.1} parent=1 // pred_fallthru
      _
    // Predicated region
    $region10: #{tpu_custom_call.1} parent=1 // pred_check
      _
    $region11: #{tpu_custom_call.1} parent=1 // pred_check_branch
      %24 = sbr.rel (0) target = $region13
    $region12: #{tpu_custom_call.1} parent=1 // pred_region
      _
    $region13: #{tpu_custom_call.1} parent=1 // pred_fallthru
      _
    // Predicated region
    $region14: #{tpu_custom_call.1} parent=1 // pred_check
      _
    $region15: #{tpu_custom_call.1} parent=1 // pred_check_branch
      %26 = sbr.rel (0) target = $region17
    $region16: #{tpu_custom_call.1} parent=1 // pred_region
      _
    $region17: #{tpu_custom_call.1} parent=1 // pred_fallthru
      _
    // Predicated region
    $region18: #{tpu_custom_call.1} parent=1 // pred_check
      _
    $region19: #{tpu_custom_call.1} parent=1 // pred_check_branch
      %28 = sbr.rel (0) target = $region21
    $region20: #{tpu_custom_call.1} parent=1 // pred_region
      _
    $region21: #{tpu_custom_call.1} parent=1 // pred_fallthru
      _
    // Predicated region
    $region22: #{tpu_custom_call.1} parent=1 // pred_check
      _
    $region23: #{tpu_custom_call.1} parent=1 // pred_check_branch
      %30 = sbr.rel (0) target = $region25
    $region24: #{tpu_custom_call.1} parent=1 // pred_region
      _
    $region25: #{tpu_custom_call.1} parent=1 // pred_fallthru
      _
    // Predicated region
    $region26: #{tpu_custom_call.1} parent=1 // pred_check
      _
    $region27: #{tpu_custom_call.1} parent=1 // pred_check_branch
      %32 = sbr.rel (0) target = $region29
    $region28: #{tpu_custom_call.1} parent=1 // pred_region
      _
    $region29: #{tpu_custom_call.1} parent=1 // pred_fallthru
      _
    // Predicated region
    $region30: #{tpu_custom_call.1} parent=1 // pred_check
      _
    $region31: #{tpu_custom_call.1} parent=1 // pred_check_branch
      %34 = sbr.rel (0) target = $region33
    $region32: #{tpu_custom_call.1} parent=1 // pred_region
      _
    $region33: #{tpu_custom_call.1} parent=1 // pred_fallthru
      _
    // Predicated region
    $region34: #{tpu_custom_call.1} parent=1 // pred_check
      _
    $region35: #{tpu_custom_call.1} parent=1 // pred_check_branch
      %36 = sbr.rel (0) target = $region37
    $region36: #{tpu_custom_call.1} parent=1 // pred_region
      _
    $region37: #{tpu_custom_call.1} parent=1 // pred_fallthru
      _
    // Predicated region
    $region38: #{tpu_custom_call.1} parent=1 // pred_check
      _
    $region39: #{tpu_custom_call.1} parent=1 // pred_check_branch
      %38 = sbr.rel (0) target = $region41
    $region40: #{tpu_custom_call.1} parent=1 // pred_region
      _
    $region41: #{tpu_custom_call.1} parent=1 // pred_fallthru
      _
    // Predicated region
    $region42: #{tpu_custom_call.1} parent=1 // pred_check
      _
    $region43: #{tpu_custom_call.1} parent=1 // pred_check_branch
      %40 = sbr.rel (0) target = $region45
    $region44: #{tpu_custom_call.1} parent=1 // pred_region
      _
    $region45: #{tpu_custom_call.1} parent=1 // pred_fallthru
      _
    // Predicated region
    $region46: #{tpu_custom_call.1} parent=1 // pred_check
      _
    $region47: #{tpu_custom_call.1} parent=1 // pred_check_branch
      %42 = sbr.rel (0) target = $region49
    $region48: #{tpu_custom_call.1} parent=1 // pred_region
      _
    $region49: #{tpu_custom_call.1} parent=1 // pred_fallthru
      _
    // Predicated region
    $region50: #{tpu_custom_call.1} parent=1 // pred_check
      _
    $region51: #{tpu_custom_call.1} parent=1 // pred_check_branch
      %44 = sbr.rel (0) target = $region53
    $region52: #{tpu_custom_call.1} parent=1 // pred_region
      _
    $region53: #{tpu_custom_call.1} parent=1 // pred_fallthru
      _
    %v46 = vld [vmem:[%s0] sm:$0xf]
    %v47 = vld [vmem:[%s1] sm:$0x3]
    %v48 = vld [vmem:[%s2] sm:$0x1]
    %v50 = vlaneseq
    %v51 = vshrl.u32 %v50, 7
    %v52 = vsub.s32 0, %v51
    %v53 = vrot.slane %v48, %v52
    %vm55 = vcmask 31744
    %v57 = vsel %vm55, %v46, 0
    %vm59 = vcmask 1041408
    %v61 = vsel %vm59, %v47, 0
    %63 = vmatprep.subr.bf16.mxu0 0
    %64 = vmatpush1.bf16.msra.mxu0 %v61
    %65 = vmatprep.subr.bf16.mxu0 0
    %66 = vmatpush1.bf16.msra.mxu0 0
    %67 = vmatprep.subr.bf16.mxu0 0
    %68 = vmatpush1.bf16.msra.mxu0 0
    %69 = vmatprep.subr.bf16.mxu0 0
    %70 = vmatpush1.bf16.msra.mxu0 0
    %71 = vmatprep.subr.bf16.mxu0 0
    %72 = vmatpush1.bf16.msra.mxu0 0
    %73 = vmatprep.subr.bf16.mxu0 0
    %74 = vmatpush1.bf16.msra.mxu0 0
    %75 = vmatprep.subr.bf16.mxu0 0
    %76 = vmatpush1.bf16.msra.mxu0 0
    %77 = vmatprep.subr.bf16.mxu0 0
    %78 = vmatpush1.bf16.msra.mxu0 0
    %79 = vmatprep.subr.bf16.mxu0 0
    %80 = vmatpush1.bf16.msra.mxu0 0
    %81 = vmatprep.subr.bf16.mxu0 0
    %82 = vmatpush1.bf16.msra.mxu0 0
    %83 = vmatprep.subr.bf16.mxu0 0
    %84 = vmatpush1.bf16.msra.mxu0 0
    %85 = vmatprep.subr.bf16.mxu0 0
    %86 = vmatpush1.bf16.msra.mxu0 0
    %87 = vmatprep.subr.bf16.mxu0 0
    %88 = vmatpush1.bf16.msra.mxu0 0
    %89 = vmatprep.subr.bf16.mxu0 0
    %90 = vmatpush1.bf16.msra.mxu0 0
    %91 = vmatprep.subr.bf16.mxu0 0
    %92 = vmatpush1.bf16.msra.mxu0 0
    %93 = vmatprep.subr.bf16.mxu0 0
    %94 = vmatpush1.bf16.msra.mxu0 0
    %95 = vmatprep.mubr.bf16.mxu0 0
    %96 = vmatmul.mubr.bf16.gmra.mrb[0].mxu0 %v57
    %v97 = vpop.f32.mrb[0].mxu0
    %v98 = vadd.f32 %v53, %v97
    %v99 = vpop.f32.mrb[0].mxu0
    %v100 = vpop.f32.mrb[0].mxu0
    %v101 = vpop.f32.mrb[0].mxu0
    %102 = vdwg.mxu0
    %v103 = vtanh.pop %v98
    %v104 = vpack.c.bf16 %v103, %v103
    %v105 = vld [vmem:[%s3] sm:$0xf]
    %v106 = vld [vmem:[%s3 + $0x4] sm:$0xf]
    %v107 = vld [vmem:[%s4] sm:$0x1]
    %v109 = vlaneseq
    %v110 = vshrl.u32 %v109, 7
    %v111 = vsub.s32 0, %v110
    %v112 = vrot.slane %v107, %v111
    %v116 = vunpack.c.l.b16 %v105
    %v117 = vunpack.c.l.b16 %v106
    %v118 = vpack.c.b16 %v117, %v116
    %vm120 = vcmask 130048
    %v122 = vsel %vm120, %v104, 0
    %124 = vmatprep.subr.bf16.mxu0 0
    %125 = vmatpush1.bf16.msra.mxu0 %v118
    %126 = vmatprep.subr.bf16.mxu0 0
    %127 = vmatpush1.bf16.msra.mxu0 0
    %128 = vmatprep.subr.bf16.mxu0 0
    %129 = vmatpush1.bf16.msra.mxu0 0
    %130 = vmatprep.subr.bf16.mxu0 0
    %131 = vmatpush1.bf16.msra.mxu0 0
    %132 = vmatprep.subr.bf16.mxu0 0
    %133 = vmatpush1.bf16.msra.mxu0 0
    %134 = vmatprep.subr.bf16.mxu0 0
    %135 = vmatpush1.bf16.msra.mxu0 0
    %136 = vmatprep.subr.bf16.mxu0 0
    %137 = vmatpush1.bf16.msra.mxu0 0
    %138 = vmatprep.subr.bf16.mxu0 0
    %139 = vmatpush1.bf16.msra.mxu0 0
    %140 = vmatprep.subr.bf16.mxu0 0
    %141 = vmatpush1.bf16.msra.mxu0 0
    %142 = vmatprep.subr.bf16.mxu0 0
    %143 = vmatpush1.bf16.msra.mxu0 0
    %144 = vmatprep.subr.bf16.mxu0 0
    %145 = vmatpush1.bf16.msra.mxu0 0
    %146 = vmatprep.subr.bf16.mxu0 0
    %147 = vmatpush1.bf16.msra.mxu0 0
    %148 = vmatprep.subr.bf16.mxu0 0
    %149 = vmatpush1.bf16.msra.mxu0 0
    %150 = vmatprep.subr.bf16.mxu0 0
    %151 = vmatpush1.bf16.msra.mxu0 0
    %152 = vmatprep.subr.bf16.mxu0 0
    %153 = vmatpush1.bf16.msra.mxu0 0
    %154 = vmatprep.subr.bf16.mxu0 0
    %155 = vmatpush1.bf16.msra.mxu0 0
    %156 = vmatprep.mubr.bf16.mxu0 0
    %157 = vmatmul.mubr.bf16.gmra.mrb[0].mxu0 %v122
    %v158 = vpop.f32.mrb[0].mxu0
    %v159 = vadd.f32 %v112, %v158
    %v160 = vpop.f32.mrb[0].mxu0
    %v161 = vpop.f32.mrb[0].mxu0
    %v162 = vpop.f32.mrb[0].mxu0
    %163 = vdwg.mxu0
    %v164 = vtanh.pop %v159
    %v165 = vpack.c.bf16 %v164, %v164
    %v166 = vld [vmem:[%s5] sm:$0xf]
    %v167 = vld [vmem:[%s5 + $0x4] sm:$0xf]
    %v168 = vld [vmem:[%s5 + $0x8] sm:$0xf]
    %v169 = vld [vmem:[%s5 + $0xc] sm:$0xf]
    %v170 = vld [vmem:[%s6] sm:$0x1]
    %v172 = vlaneseq
    %v173 = vshrl.u32 %v172, 7
    %v174 = vsub.s32 0, %v173
    %v175 = vrot.slane %v170, %v174
    %v181 = vunpack.c.l.b16 %v166
    %v182 = vunpack.c.l.b16 %v167
    %v183 = vunpack.c.l.b16 %v168
    %v184 = vunpack.c.l.b16 %v169
    %v185 = vpack.c.b16 %v182, %v181
    %v186 = vpack.c.b16 %v184, %v183
    %vm189 = vcmask 261120
    %v191 = vsel %vm189, %v165, 0
    %193 = vmatprep.subr.bf16.mxu0 0
    %194 = vmatpush1.bf16.msra.mxu0 %v185
    %195 = vmatprep.subr.bf16.mxu0 0
    %196 = vmatpush1.bf16.msra.mxu0 %v186
    %197 = vmatprep.subr.bf16.mxu0 0
    %198 = vmatpush1.bf16.msra.mxu0 0
    %199 = vmatprep.subr.bf16.mxu0 0
    %200 = vmatpush1.bf16.msra.mxu0 0
    %201 = vmatprep.subr.bf16.mxu0 0
    %202 = vmatpush1.bf16.msra.mxu0 0
    %203 = vmatprep.subr.bf16.mxu0 0
    %204 = vmatpush1.bf16.msra.mxu0 0
    %205 = vmatprep.subr.bf16.mxu0 0
    %206 = vmatpush1.bf16.msra.mxu0 0
    %207 = vmatprep.subr.bf16.mxu0 0
    %208 = vmatpush1.bf16.msra.mxu0 0
    %209 = vmatprep.subr.bf16.mxu0 0
    %210 = vmatpush1.bf16.msra.mxu0 0
    %211 = vmatprep.subr.bf16.mxu0 0
    %212 = vmatpush1.bf16.msra.mxu0 0
    %213 = vmatprep.subr.bf16.mxu0 0
    %214 = vmatpush1.bf16.msra.mxu0 0
    %215 = vmatprep.subr.bf16.mxu0 0
    %216 = vmatpush1.bf16.msra.mxu0 0
    %217 = vmatprep.subr.bf16.mxu0 0
    %218 = vmatpush1.bf16.msra.mxu0 0
    %219 = vmatprep.subr.bf16.mxu0 0
    %220 = vmatpush1.bf16.msra.mxu0 0
    %221 = vmatprep.subr.bf16.mxu0 0
    %222 = vmatpush1.bf16.msra.mxu0 0
    %223 = vmatprep.subr.bf16.mxu0 0
    %224 = vmatpush1.bf16.msra.mxu0 0
    %225 = vmatprep.mubr.bf16.mxu0 0
    %226 = vmatmul.mubr.bf16.gmra.mrb[0].mxu0 %v191
    %v227 = vpop.f32.mrb[0].mxu0
    %v228 = vadd.f32 %v175, %v227
    %v229 = vpop.f32.mrb[0].mxu0
    %v230 = vpop.f32.mrb[0].mxu0
    %v231 = vpop.f32.mrb[0].mxu0
    %232 = vdwg.mxu0
    %v233 = vtanh.pop %v228
    %v234 = vpack.c.bf16 %v233, %v233
    %v235 = vld [vmem:[%s7] sm:$0xf]
    %v236 = vld [vmem:[%s7 + $0x4] sm:$0xf]
    %v237 = vld [vmem:[%s8] sm:$0x1]
    %v239 = vlaneseq
    %v240 = vshrl.u32 %v239, 7
    %v241 = vsub.s32 0, %v240
    %v242 = vrot.slane %v237, %v241
    %v246 = vunpack.c.l.b16 %v235
    %v247 = vunpack.c.l.b16 %v236
    %v248 = vpack.c.b16 %v247, %v246
    %v251 = vsel %vm120, %v234, 0
    %253 = vmatprep.subr.bf16.mxu0 0
    %254 = vmatpush1.bf16.msra.mxu0 %v248
    %255 = vmatprep.subr.bf16.mxu0 0
    %256 = vmatpush1.bf16.msra.mxu0 0
    %257 = vmatprep.subr.bf16.mxu0 0
    %258 = vmatpush1.bf16.msra.mxu0 0
    %259 = vmatprep.subr.bf16.mxu0 0
    %260 = vmatpush1.bf16.msra.mxu0 0
    %261 = vmatprep.subr.bf16.mxu0 0
    %262 = vmatpush1.bf16.msra.mxu0 0
    %263 = vmatprep.subr.bf16.mxu0 0
    %264 = vmatpush1.bf16.msra.mxu0 0
    %265 = vmatprep.subr.bf16.mxu0 0
    %266 = vmatpush1.bf16.msra.mxu0 0
    %267 = vmatprep.subr.bf16.mxu0 0
    %268 = vmatpush1.bf16.msra.mxu0 0
    %269 = vmatprep.subr.bf16.mxu0 0
    %270 = vmatpush1.bf16.msra.mxu0 0
    %271 = vmatprep.subr.bf16.mxu0 0
    %272 = vmatpush1.bf16.msra.mxu0 0
    %273 = vmatprep.subr.bf16.mxu0 0
    %274 = vmatpush1.bf16.msra.mxu0 0
    %275 = vmatprep.subr.bf16.mxu0 0
    %276 = vmatpush1.bf16.msra.mxu0 0
    %277 = vmatprep.subr.bf16.mxu0 0
    %278 = vmatpush1.bf16.msra.mxu0 0
    %279 = vmatprep.subr.bf16.mxu0 0
    %280 = vmatpush1.bf16.msra.mxu0 0
    %281 = vmatprep.subr.bf16.mxu0 0
    %282 = vmatpush1.bf16.msra.mxu0 0
    %283 = vmatprep.subr.bf16.mxu0 0
    %284 = vmatpush1.bf16.msra.mxu0 0
    %285 = vmatprep.mubr.bf16.mxu0 0
    %286 = vmatmul.mubr.bf16.gmra.mrb[0].mxu0 %v251
    %v287 = vpop.f32.mrb[0].mxu0
    %v288 = vadd.f32 %v242, %v287
    %v289 = vpop.f32.mrb[0].mxu0
    %v290 = vpop.f32.mrb[0].mxu0
    %v291 = vpop.f32.mrb[0].mxu0
    %292 = vdwg.mxu0
    %v293 = vtanh.pop %v288
    %v294 = vpack.c.bf16 %v293, %v293
    %v295 = vld [vmem:[%s9] sm:$0xf]
    %v296 = vld [vmem:[%s10] sm:$0x1]
    %v298 = vlaneseq
    %v299 = vshrl.u32 %v298, 7
    %v300 = vsub.s32 0, %v299
    %v301 = vrot.slane %v296, %v300
    %vm303 = vcmask 64512
    %v305 = vsel %vm303, %v294, 0
    %vm307 = vcmask 1043456
    %v309 = vsel %vm307, %v295, 0
    %311 = vmatprep.subr.bf16.mxu0 0
    %312 = vmatpush1.bf16.msra.mxu0 %v309
    %313 = vmatprep.subr.bf16.mxu0 0
    %314 = vmatpush1.bf16.msra.mxu0 0
    %315 = vmatprep.subr.bf16.mxu0 0
    %316 = vmatpush1.bf16.msra.mxu0 0
    %317 = vmatprep.subr.bf16.mxu0 0
    %318 = vmatpush1.bf16.msra.mxu0 0
    %319 = vmatprep.subr.bf16.mxu0 0
    %320 = vmatpush1.bf16.msra.mxu0 0
    %321 = vmatprep.subr.bf16.mxu0 0
    %322 = vmatpush1.bf16.msra.mxu0 0
    %323 = vmatprep.subr.bf16.mxu0 0
    %324 = vmatpush1.bf16.msra.mxu0 0
    %325 = vmatprep.subr.bf16.mxu0 0
    %326 = vmatpush1.bf16.msra.mxu0 0
    %327 = vmatprep.subr.bf16.mxu0 0
    %328 = vmatpush1.bf16.msra.mxu0 0
    %329 = vmatprep.subr.bf16.mxu0 0
    %330 = vmatpush1.bf16.msra.mxu0 0
    %331 = vmatprep.subr.bf16.mxu0 0
    %332 = vmatpush1.bf16.msra.mxu0 0
    %333 = vmatprep.subr.bf16.mxu0 0
    %334 = vmatpush1.bf16.msra.mxu0 0
    %335 = vmatprep.subr.bf16.mxu0 0
    %336 = vmatpush1.bf16.msra.mxu0 0
    %337 = vmatprep.subr.bf16.mxu0 0
    %338 = vmatpush1.bf16.msra.mxu0 0
    %339 = vmatprep.subr.bf16.mxu0 0
    %340 = vmatpush1.bf16.msra.mxu0 0
    %341 = vmatprep.subr.bf16.mxu0 0
    %342 = vmatpush1.bf16.msra.mxu0 0
    %343 = vmatprep.mubr.bf16.mxu0 0
    %344 = vmatmul.mubr.bf16.gmra.mrb[0].mxu0 %v305
    %v345 = vpop.f32.mrb[0].mxu0
    %v346 = vadd.f32 %v301, %v345
    %v347 = vpop.f32.mrb[0].mxu0
    %v348 = vpop.f32.mrb[0].mxu0
    %v349 = vpop.f32.mrb[0].mxu0
    %350 = vdwg.mxu0
    %v351 = vtanh.pop %v346
    %v352 = vpack.c.bf16 %v351, %v351
    %v353 = vld [vmem:[%s11] sm:$0x3]
    %v354 = vld [vmem:[%s12] sm:$0x1]
    %v356 = vlaneseq
    %v357 = vshrl.u32 %v356, 7
    %v358 = vsub.s32 0, %v357
    %v359 = vrot.slane %v354, %v358
    %v362 = vsel %vm55, %v352, 0
    %v365 = vsel %vm59, %v353, 0
    %367 = vmatprep.subr.bf16.mxu0 0
    %368 = vmatpush1.bf16.msra.mxu0 %v365
    %369 = vmatprep.subr.bf16.mxu0 0
    %370 = vmatpush1.bf16.msra.mxu0 0
    %371 = vmatprep.subr.bf16.mxu0 0
    %372 = vmatpush1.bf16.msra.mxu0 0
    %373 = vmatprep.subr.bf16.mxu0 0
    %374 = vmatpush1.bf16.msra.mxu0 0
    %375 = vmatprep.subr.bf16.mxu0 0
    %376 = vmatpush1.bf16.msra.mxu0 0
    %377 = vmatprep.subr.bf16.mxu0 0
    %378 = vmatpush1.bf16.msra.mxu0 0
    %379 = vmatprep.subr.bf16.mxu0 0
    %380 = vmatpush1.bf16.msra.mxu0 0
    %381 = vmatprep.subr.bf16.mxu0 0
    %382 = vmatpush1.bf16.msra.mxu0 0
    %383 = vmatprep.subr.bf16.mxu0 0
    %384 = vmatpush1.bf16.msra.mxu0 0
    %385 = vmatprep.subr.bf16.mxu0 0
    %386 = vmatpush1.bf16.msra.mxu0 0
    %387 = vmatprep.subr.bf16.mxu0 0
    %388 = vmatpush1.bf16.msra.mxu0 0
    %389 = vmatprep.subr.bf16.mxu0 0
    %390 = vmatpush1.bf16.msra.mxu0 0
    %391 = vmatprep.subr.bf16.mxu0 0
    %392 = vmatpush1.bf16.msra.mxu0 0
    %393 = vmatprep.subr.bf16.mxu0 0
    %394 = vmatpush1.bf16.msra.mxu0 0
    %395 = vmatprep.subr.bf16.mxu0 0
    %396 = vmatpush1.bf16.msra.mxu0 0
    %397 = vmatprep.subr.bf16.mxu0 0
    %398 = vmatpush1.bf16.msra.mxu0 0
    %399 = vmatprep.mubr.bf16.mxu0 0
    %400 = vmatmul.mubr.bf16.gmra.mrb[0].mxu0 %v362
    %v401 = vpop.f32.mrb[0].mxu0
    %v402 = vadd.f32 %v359, %v401
    %v403 = vpop.f32.mrb[0].mxu0
    %v404 = vpop.f32.mrb[0].mxu0
    %v405 = vpop.f32.mrb[0].mxu0
    %406 = vdwg.mxu0
    %407 = vst [vmem:[#allocation2] sm:$0xff] %v402
    // Predicated region
    $region54: #{tpu_custom_call.1} parent=1 // pred_check
      _
    $region55: #{tpu_custom_call.1} parent=1 // pred_check_branch
      %409 = sbr.rel (0) target = $region57
    $region56: #{tpu_custom_call.1} parent=1 // pred_region
      %s411 = ssub.s32 128, 128
      %412 = vsyncadd [#allocation3], %s411
      %s414 = sshll.u32 [#allocation2], 4
      %s415 = int_to_ptr.vmem [resolvable:$true] %s414
      %417 = dma.vmem_to_hbm [thread:$0]  %s415, 128, %s13, [#allocation3]
    $region57: #{tpu_custom_call.1} parent=1 // pred_fallthru
      _
    // Predicated region
    $region58: #{tpu_custom_call.1} parent=1 // pred_check
      _
    $region59: #{tpu_custom_call.1} parent=1 // pred_check_branch
      %419 = sbr.rel (0) target = $region61
    $region60: #{tpu_custom_call.1} parent=1 // pred_region
      %420 = dma.done [#allocation3], 128
    $region61: #{tpu_custom_call.1} parent=1 // pred_fallthru
      _
    %421 = vsyncpa [#allocation3], 1

</llo_original>
